<compile_context>
chip_gen: v7x
topology: tpu7x:2x2x1
jax: 0.10.0
libtpu: 0.0.40
codegen_flags: <defaults>
</compile_context>

<pallas_src>
import functools

import jax
import jax.numpy as jnp
from jax.experimental import pallas as pl
from jax.experimental.pallas import tpu as pltpu


def _fused_conv_kernel(p_ref, w_ref, b_ref, o_ref):
    """One grid step: out = relu(W_fused @ patches + bias), lane-dense output.

    p_ref: [1, KKCp, TN]   im2col patches (contraction on sublanes, spatial on lanes)
    w_ref: [3*Cout, KKCp]  fused + transposed conv weight
    b_ref: [3*Cout, 1]     fused bias
    o_ref: [1, 3*Cout, TN] output block (lane dim = TN, unmasked stores)
    """
    acc = jnp.dot(w_ref[...], p_ref[0], preferred_element_type=jnp.float32)
    o_ref[0] = jnp.maximum(acc + b_ref[...], 0.0).astype(o_ref.dtype)


def _pick_spatial_tile(ww):
    for t in (512, 256, 128):
        if ww % t == 0:
            return t
    return ww


def convolutional_net_forward(input_images, params, cnn_kernel_size):
    """Pallas implementation of ConvolutionalNet.forward (eval mode).

    input_images: [B, W, W, C] (same layout as the PyTorch forward).
    returns:      [B, W*W, 3*num_conv_channels]
    """
    assert cnn_kernel_size % 2 == 1, "cnn_kernel_size must be odd"
    B, A1, A2, C = input_images.shape
    w1_t, b1 = params["w1"], params["b1"]
    w2_t, b2 = params["w2"], params["b2"]
    w3_t, b3 = params["w3"], params["b3"]
    Cout = w1_t.shape[0]
    Cfeat = 3 * Cout

    # Fused kernel extent: covers the 1x1, 5x5 and KxK convs (all centered,
    # "same" padding k//2 for each).
    Kf = max(5, cnn_kernel_size)
    P = Kf // 2

    # Torch OIHW weights -> [kh', kw', Cin, Cout] with the spatial transpose
    # that absorbs the transpose(1, 3) sandwich of the PyTorch forward.
    def to_kernel_w(w):
        return jnp.transpose(w, (3, 2, 1, 0))

    def embed(wk):
        k = wk.shape[0]
        off = (Kf - k) // 2
        return jnp.pad(wk, ((off, Kf - k - off), (off, Kf - k - off),
                            (0, 0), (0, 0)))

    # Fused weight [Kf, Kf, C, 3*Cout] and bias [3*Cout].
    w_fused = jnp.concatenate(
        [embed(to_kernel_w(w1_t)),
         embed(to_kernel_w(w2_t)),
         embed(to_kernel_w(w3_t))], axis=-1)
    b_fused = jnp.concatenate([b1, b2, b3]).reshape(Cfeat, 1)

    KKC = Kf * Kf * C
    KKCp = ((KKC + 7) // 8) * 8                      # sublane-align contraction
    w_kernel = jnp.transpose(w_fused.reshape(KKC, Cfeat), (1, 0))   # [3*Cout, KKC]
    w_kernel = jnp.pad(w_kernel, ((0, 0), (0, KKCp - KKC)))

    # im2col in the wrapper: [B, KKCp, W*W] (contraction dim second, spatial
    # flattened on the last/lane axis).  Column order (dy, dx, c) matches the
    # row-major reshape of w_fused above.
    xp = jnp.pad(input_images, ((0, 0), (P, P), (P, P), (0, 0)))
    cols = []
    for dy in range(Kf):
        for dx in range(Kf):
            cols.append(xp[:, dy:dy + A1, dx:dx + A2, :])            # [B,A1,A2,C]
    patches = jnp.concatenate(cols, axis=-1)                         # [B,A1,A2,KKC]
    patches = patches.reshape(B, A1 * A2, KKC)
    patches = jnp.transpose(patches, (0, 2, 1))                      # [B,KKC,WW]
    patches = jnp.pad(patches, ((0, 0), (0, KKCp - KKC), (0, 0)))    # [B,KKCp,WW]

    WW = A1 * A2
    TN = _pick_spatial_tile(WW)
    grid = (B, WW // TN)

    grid_spec = pltpu.PrefetchScalarGridSpec(
        num_scalar_prefetch=0,
        grid=grid,
        in_specs=[
            pl.BlockSpec((1, KKCp, TN), lambda b, j: (b, 0, j)),
            pl.BlockSpec((Cfeat, KKCp), lambda b, j: (0, 0)),
            pl.BlockSpec((Cfeat, 1), lambda b, j: (0, 0)),
        ],
        out_specs=pl.BlockSpec((1, Cfeat, TN), lambda b, j: (b, 0, j)),
    )

    out_t = pl.pallas_call(
        _fused_conv_kernel,
        out_shape=jax.ShapeDtypeStruct((B, Cfeat, WW), jnp.float32),
        grid_spec=grid_spec,
        compiler_params=pltpu.CompilerParams(
            dimension_semantics=("parallel", "parallel")),
    )(patches, w_kernel, b_fused)

    # [B, 3*Cout, W*W] (lane-dense kernel output) -> [B, W*W, 3*Cout].
    return jnp.transpose(out_t, (0, 2, 1))


def init_params(key, num_channels, num_conv_channels, cnn_kernel_size):
    """Deterministic synthetic parameters (torch Conv2d layout: [O, I, kH, kW])."""
    ks = jax.random.split(key, 6)

    def conv_w(k, ksize):
        return 0.1 * jax.random.normal(
            k, (num_conv_channels, num_channels, ksize, ksize), jnp.float32)

    return {
        "w1": conv_w(ks[0], 1),
        "b1": 0.1 * jax.random.normal(ks[1], (num_conv_channels,), jnp.float32),
        "w2": conv_w(ks[2], 5),
        "b2": 0.1 * jax.random.normal(ks[3], (num_conv_channels,), jnp.float32),
        "w3": conv_w(ks[4], cnn_kernel_size),
        "b3": 0.1 * jax.random.normal(ks[5], (num_conv_channels,), jnp.float32),
    }


def reference_forward(input_images, params, cnn_kernel_size):
    """Pure-JAX replica of the PyTorch forward (eval mode) for validation."""
    x = jnp.transpose(input_images, (0, 3, 2, 1))     # transpose(1, 3) -> NCHW

    def conv(w, b, pad):
        out = jax.lax.conv_general_dilated(
            x, w, window_strides=(1, 1),
            padding=[(pad, pad), (pad, pad)],
            dimension_numbers=("NCHW", "OIHW", "NCHW"),
            precision=jax.lax.Precision.HIGHEST)
        return out + b[None, :, None, None]

    c1 = conv(params["w1"], params["b1"], 0)
    c2 = conv(params["w2"], params["b2"], 2)
    c3 = conv(params["w3"], params["b3"], cnn_kernel_size // 2)
    feat = jnp.concatenate([c1, c2, c3], axis=1)      # [B, 3*Cout, A2, A1]
    feat = jnp.transpose(feat, (0, 3, 2, 1))          # transpose(1, 3)
    feat = jnp.maximum(feat, 0.0)                     # relu; dropout = identity
    B = input_images.shape[0]
    return feat.reshape(B, feat.shape[1] * feat.shape[2], feat.shape[3])


if __name__ == "__main__":
    key = jax.random.PRNGKey(0)
    k_in, k_par = jax.random.split(key)

    B, W, C = 2, 16, 4          # batch, image_width, image_channels
    Cout = 8                    # num_conv_channels
    K = 7                       # cnn_kernel_size (odd, as the module requires)

    x = jax.random.normal(k_in, (B, W, W, C), jnp.float32)
    params = init_params(k_par, C, Cout, K)

    fwd = jax.jit(convolutional_net_forward, static_argnums=(2,))
    out = fwd(x, params, K)
    out = jax.block_until_ready(out)

    ref = reference_forward(x, params, K)
    assert out.shape == (B, W * W, 3 * Cout), out.shape
    if not jnp.allclose(out, ref, atol=2e-3, rtol=2e-3):
        raise AssertionError(
            f"mismatch, max abs err = {jnp.max(jnp.abs(out - ref))}")
    print("KERNEL_OK")
</pallas_src>

<mosaic_0001>
module attributes {stable_mosaic.version = 11 : i64} {
  func.func @_fused_conv_kernel(%arg0: i32, %arg1: i32, %arg2: memref<1x200x256xf32, #tpu.memory_space<vmem>>, %arg3: memref<24x200xf32, #tpu.memory_space<vmem>>, %arg4: memref<24x1xf32, #tpu.memory_space<vmem>>, %arg5: memref<1x24x256xf32, #tpu.memory_space<vmem>>) attributes {dimension_semantics = [#tpu.dimension_semantics<parallel>, #tpu.dimension_semantics<parallel>], iteration_bounds = array<i64: 2, 1>, scalar_prefetch = 0 : i64, scratch_operands = 0 : i64, tpu.core_type = #tpu.core_type<tc>, window_params = [{transform_indices = @transform_0, window_bounds = array<i64: 1, 200, 256>}, {pipeline_mode = #tpu.pipeline_mode<synchronous>, transform_indices = @transform_1, window_bounds = array<i64: 24, 200>}, {pipeline_mode = #tpu.pipeline_mode<synchronous>, transform_indices = @transform_2, window_bounds = array<i64: 24, 1>}, {transform_indices = @transform_3, window_bounds = array<i64: 1, 24, 256>}]} {
    %c0 = arith.constant 0 : index
    %c0_0 = arith.constant 0 : index
    %0 = vector.load %arg3[%c0, %c0_0] : memref<24x200xf32, #tpu.memory_space<vmem>>, vector<24x200xf32>
    %c0_1 = arith.constant 0 : index
    %c0_2 = arith.constant 0 : index
    %c0_3 = arith.constant 0 : index
    %1 = vector.load %arg2[%c0_1, %c0_2, %c0_3] : memref<1x200x256xf32, #tpu.memory_space<vmem>>, vector<1x200x256xf32>
    %2 = vector.shape_cast %1 : vector<1x200x256xf32> to vector<200x256xf32>
    %cst = arith.constant dense<0.000000e+00> : vector<24x256xf32>
    %3 = tpu.matmul %0, %2, %cst {dimension_numbers = #tpu.dot_dimension_numbers<[1], [0], [0], [1], [0, 0, 1, 1], [], []>} : vector<24x200xf32>, vector<200x256xf32>, vector<24x256xf32> -> vector<24x256xf32>
    %c0_4 = arith.constant 0 : index
    %c0_5 = arith.constant 0 : index
    %4 = vector.load %arg4[%c0_4, %c0_5] : memref<24x1xf32, #tpu.memory_space<vmem>>, vector<24x1xf32>
    %5 = vector.broadcast %4 : vector<24x1xf32> to vector<24x256xf32>
    %6 = arith.addf %3, %5 : vector<24x256xf32>
    %cst_6 = arith.constant 0.000000e+00 : f32
    %7 = vector.broadcast %cst_6 : f32 to vector<24x256xf32>
    %8 = arith.maximumf %6, %7 : vector<24x256xf32>
    %c0_7 = arith.constant 0 : index
    %c0_8 = arith.constant 0 : index
    %c0_9 = arith.constant 0 : index
    %9 = vector.load %arg5[%c0_7, %c0_8, %c0_9] : memref<1x24x256xf32, #tpu.memory_space<vmem>>, vector<1x24x256xf32>
    %10 = vector.shape_cast %9 : vector<1x24x256xf32> to vector<24x256xf32>
    %11 = vector.shape_cast %8 : vector<24x256xf32> to vector<1x24x256xf32>
    tpu.vector_store %arg5[%c0_7, %c0_8, %c0_9], %11 {strides = array<i32>} : memref<1x24x256xf32, #tpu.memory_space<vmem>>, vector<1x24x256xf32>,
    return
  }
  func.func @transform_0(%arg0: i32, %arg1: i32) -> (i32, i32, i32) {
    %c0_i32 = arith.constant 0 : i32
    %c0_i32_0 = arith.constant 0 : i32
    return %arg0, %c0_i32, %arg1 : i32, i32, i32
  }
  func.func @transform_1(%arg0: i32, %arg1: i32) -> (i32, i32) {
    %c0_i32 = arith.constant 0 : i32
    %c0_i32_0 = arith.constant 0 : i32
    %c0_i32_1 = arith.constant 0 : i32
    return %c0_i32, %c0_i32_0 : i32, i32
  }
  func.func @transform_2(%arg0: i32, %arg1: i32) -> (i32, i32) {
    %c0_i32 = arith.constant 0 : i32
    %c0_i32_0 = arith.constant 0 : i32
    %c0_i32_1 = arith.constant 0 : i32
    return %c0_i32, %c0_i32_0 : i32, i32
  }
  func.func @transform_3(%arg0: i32, %arg1: i32) -> (i32, i32, i32) {
    %c0_i32 = arith.constant 0 : i32
    %c0_i32_0 = arith.constant 0 : i32
    return %arg0, %c0_i32, %arg1 : i32, i32, i32
  }
}

</mosaic_0001>

<llo_original>
// kernel: convolutional_net_forward.1
$region0: #{convolutional_net_forward.1}
  #allocation0 [shape = 'u32[]', space=smem, size = 0x4, offset = 0x4, fixed_abs, tag = 'smem constant byte address 0x4 - core index']
  #allocation1 [shape = 'u32[144,128]{1,0:T(1,128)}', space=vmem, size = 0x12000, scoped, tag = 'internal scratch']
  %s0 = inlined_call_operand.vmem [shape: f32[2,200,256], index: 0, kind: input, shape index: {}]
  %s1 = inlined_call_operand.vmem [shape: f32[24,200], index: 1, kind: input, shape index: {}]
  %s2 = inlined_call_operand.vmem [shape: f32[24,1], index: 2, kind: input, shape index: {}]
  %s3 = inlined_call_operand.hbm [shape: f32[2,24,256], index: 3, kind: output, shape index: {}]
  %s4 = sld [smem:[#allocation0]]
  $region45: #{convolutional_net_forward.1} parent=0
    _
  %s6 = ssub.s32 1, %s4
  %s7 = scalar_select 0, %s6, %s4
  $region1: #{convolutional_net_forward.1} parent=0
    #allocation2 [shape = 'u8[49152]{0}', space=vmem, size = 0xc000, scoped, tag = 'output window, operand 0']
    #allocation3 [shape = 's32[2]{0}', space=sflag, size = 0x8, scoped, tag = 'scoped memory for convolutional_net_forward.1']
    %8 = vsyncpa [#allocation3], 0
    %s9 = scalar_lea.sflag [#allocation3], 1
    %10 = vsyncpa %s9, 0
    loop: start=0, step=1, limit=4
    $region2: #{convolutional_net_forward.1} parent=1 // loop_pre_header
      _
    $region3: #{convolutional_net_forward.1} parent=1 // loop_header
      %s12 = sphi 0, %s16
      %p13 = scmp.ge.s32.totalorder %s12, 4
      %s19 = sphi 0, %s31
      %s20 = sphi 0, %s27
      %s21 = sphi 0, %s19
      %s22 = sphi 0, %s20
      %s23 = sphi 0, %s21
      %s24 = sphi 0, %s22
      %s36 = sphi 0, %s38
      %s39 = sphi 0, %s36
      %s40 = sphi 0, %s39
      %s56 = sphi 0, %s40
      %s60 = sphi 0, %s60
      %s62 = sphi 0, %s60
      %s63 = sphi 0, %s62
      %s77 = sphi 0, %s63
      %s81 = sphi 0, %s81
      %s83 = sphi 0, %s81
      %s84 = sphi 0, %s83
      %s98 = sphi 0, %s84
      %s106 = sphi 0, %s108
      %s109 = sphi 0, %s106
      %s110 = sphi 0, %s109
      %s126 = sphi 0, %s110
    $region4: #{convolutional_net_forward.1} parent=1 // loop_header_branch
      %15 = sbr.rel (%p13) target = $region8
    $region5: #{convolutional_net_forward.1} parent=1 // loop_body
      %s17 = ssub.s32 %s12, 1
      %s18 = ssub.s32 %s12, 2
      %s25 = sadd.s32 1, %s20
      %p26 = scmp.ge.s32.totalorder %s25, 1
      %s27 = scalar_select %p26, 0, %s25
      %s28 = sadd.s32 1, %s19
      %s29 = scalar_select %p26, %s28, %s19
      %p30 = scmp.ge.s32.totalorder %s29, 2
      %s31 = scalar_select %p30, 0, %s29
      %s32 = ssub.s32 %s19, %s31
      %s33 = ssub.s32 %s20, %s27
      %s34 = sor.u32 %s32, %s33
      %p35 = scmp.eq.s32.totalorder %s34, 0
      %s37 = sadd.s32 %s36, 1
      %s38 = scalar_select %p35, %s36, %s37
      %p41 = pneg %p35
      %p42 = scmp.eq.s32.totalorder %s12, 1
      %p43 = por %p41, %p42
      %p44 = scmp.ne.s32.totalorder %s36, %s39
      %p45 = scmp.eq.s32.totalorder %s12, 0
      %p46 = por %p44, %p45
      %p47 = scmp.ne.s32.totalorder %s36, %s39
      %p48 = scmp.eq.s32.totalorder %s17, 1
      %p49 = por %p47, %p48
      %p50 = scmp.ne.s32.totalorder %s39, %s40
      %p51 = scmp.eq.s32.totalorder %s17, 0
      %p52 = por %p50, %p51
      %p53 = scmp.ne.s32.totalorder %s39, %s40
      %p54 = scmp.eq.s32.totalorder %s18, 1
      %p55 = por %p53, %p54
      %p57 = scmp.ne.s32.totalorder %s40, %s56
      %p58 = scmp.eq.s32.totalorder %s18, 0
      %p59 = por %p57, %p58
      %s61 = sadd.s32 %s60, 1
      %p64 = scmp.eq.s32.totalorder %s12, 1
      %p65 = scmp.ne.s32.totalorder %s60, %s62
      %p66 = scmp.eq.s32.totalorder %s12, 0
      %p67 = por %p65, %p66
      %p68 = scmp.ne.s32.totalorder %s60, %s62
      %p69 = scmp.eq.s32.totalorder %s17, 1
      %p70 = por %p68, %p69
      %p71 = scmp.ne.s32.totalorder %s62, %s63
      %p72 = scmp.eq.s32.totalorder %s17, 0
      %p73 = por %p71, %p72
      %p74 = scmp.ne.s32.totalorder %s62, %s63
      %p75 = scmp.eq.s32.totalorder %s18, 1
      %p76 = por %p74, %p75
      %p78 = scmp.ne.s32.totalorder %s63, %s77
      %p79 = scmp.eq.s32.totalorder %s18, 0
      %p80 = por %p78, %p79
      %s82 = sadd.s32 %s81, 1
      %p85 = scmp.eq.s32.totalorder %s12, 1
      %p86 = scmp.ne.s32.totalorder %s81, %s83
      %p87 = scmp.eq.s32.totalorder %s12, 0
      %p88 = por %p86, %p87
      %p89 = scmp.ne.s32.totalorder %s81, %s83
      %p90 = scmp.eq.s32.totalorder %s17, 1
      %p91 = por %p89, %p90
      %p92 = scmp.ne.s32.totalorder %s83, %s84
      %p93 = scmp.eq.s32.totalorder %s17, 0
      %p94 = por %p92, %p93
      %p95 = scmp.ne.s32.totalorder %s83, %s84
      %p96 = scmp.eq.s32.totalorder %s18, 1
      %p97 = por %p95, %p96
      %p99 = scmp.ne.s32.totalorder %s84, %s98
      %p100 = scmp.eq.s32.totalorder %s18, 0
      %p101 = por %p99, %p100
      %s102 = ssub.s32 %s19, %s31
      %s103 = ssub.s32 %s20, %s27
      %s104 = sor.u32 %s102, %s103
      %p105 = scmp.eq.s32.totalorder %s104, 0
      %s107 = sadd.s32 %s106, 1
      %s108 = scalar_select %p105, %s106, %s107
      %p111 = pneg %p105
      %p112 = scmp.eq.s32.totalorder %s12, 1
      %p113 = por %p111, %p112
      %p114 = scmp.ne.s32.totalorder %s106, %s109
      %p115 = scmp.eq.s32.totalorder %s12, 0
      %p116 = por %p114, %p115
      %p117 = scmp.ne.s32.totalorder %s106, %s109
      %p118 = scmp.eq.s32.totalorder %s17, 1
      %p119 = por %p117, %p118
      %p120 = scmp.ne.s32.totalorder %s109, %s110
      %p121 = scmp.eq.s32.totalorder %s17, 0
      %p122 = por %p120, %p121
      %p123 = scmp.ne.s32.totalorder %s109, %s110
      %p124 = scmp.eq.s32.totalorder %s18, 1
      %p125 = por %p123, %p124
      %p127 = scmp.ne.s32.totalorder %s110, %s126
      %p128 = scmp.eq.s32.totalorder %s18, 0
      %p129 = por %p127, %p128
      %p130 = scmp.le.s32.totalorder 1, %s12
      %p131 = scmp.lt.s32.totalorder %s12, 3
      %p132 = pnand %p130, %p131
      %p133 = pneg %p132
      // Predicated region
      $region9: #{convolutional_net_forward.1} parent=5 // pred_check
        _
      $region10: #{convolutional_net_forward.1} parent=5 // pred_check_branch
        %135 = sbr.rel (%p132) target = $region12
      $region11: #{convolutional_net_forward.1} parent=5 // pred_region
        %s136 = ssub.s32 %s12, 1
        // Predicated region
        $region13: #{convolutional_net_forward.1} parent=11 // pred_check
          %p137 = pneg %p73
        $region14: #{convolutional_net_forward.1} parent=11 // pred_check_branch
          %139 = sbr.rel (%p137) target = $region16
        $region15: #{convolutional_net_forward.1} parent=11 // pred_region
          _
        $region16: #{convolutional_net_forward.1} parent=11 // pred_fallthru
          _
        // Predicated region
        $region17: #{convolutional_net_forward.1} parent=11 // pred_check
          %p140 = pneg %p94
        $region18: #{convolutional_net_forward.1} parent=11 // pred_check_branch
          %142 = sbr.rel (%p140) target = $region20
        $region19: #{convolutional_net_forward.1} parent=11 // pred_region
          _
        $region20: #{convolutional_net_forward.1} parent=11 // pred_fallthru
          _
      $region12: #{convolutional_net_forward.1} parent=5 // pred_fallthru
        _
      %p143 = scmp.lt.s32.totalorder %s12, 2
      // Predicated region
      $region21: #{convolutional_net_forward.1} parent=5 // pred_check
        %p144 = pneg %p143
      $region22: #{convolutional_net_forward.1} parent=5 // pred_check_branch
        %146 = sbr.rel (%p144) target = $region24
      $region23: #{convolutional_net_forward.1} parent=5 // pred_region
        // Predicated region
        $region25: #{convolutional_net_forward.1} parent=23 // pred_check
          %p147 = pneg %p46
        $region26: #{convolutional_net_forward.1} parent=23 // pred_check_branch
          %149 = sbr.rel (%p147) target = $region28
        $region27: #{convolutional_net_forward.1} parent=23 // pred_region
          %s150 = smul.u32 2, %s20
          %p151 = scmp.lt.s32.totalorder %s19, 1
          %s152 = scalar_select %p151, %s19, 1
          %p153 = scmp.lt.s32.totalorder %s150, 1
          %s154 = scalar_select %p153, %s150, 1
          %s155 = smul.addr %s152, 50
          %s156 = sadd.s32 %s154, %s155
          %s157 = smul.addr %s156, 8
          %s158 = scalar_lea.vmem %s0, %s157
          %s159 = smul.u32 2, %s20
        $region28: #{convolutional_net_forward.1} parent=23 // pred_fallthru
          _
      $region24: #{convolutional_net_forward.1} parent=5 // pred_fallthru
        _
      %p160 = scmp.le.s32.totalorder 1, %s12
      %p161 = scmp.lt.s32.totalorder %s12, 3
      %p162 = pnand %p160, %p161
      %p163 = pneg %p162
      // Predicated region
      $region29: #{convolutional_net_forward.1} parent=5 // pred_check
        _
      $region30: #{convolutional_net_forward.1} parent=5 // pred_check_branch
        %165 = sbr.rel (%p162) target = $region32
      $region31: #{convolutional_net_forward.1} parent=5 // pred_region
        %s166 = ssub.s32 %s12, 1
        %s167 = smul.u32 2, %s22
        %p168 = scmp.lt.s32.totalorder %s21, 1
        %s169 = scalar_select %p168, %s21, 1
        %p170 = scmp.lt.s32.totalorder %s167, 1
        %s171 = scalar_select %p170, %s167, 1
        %s172 = smul.addr %s169, 50
        %s173 = sadd.s32 %s171, %s172
        %s174 = smul.addr %s173, 8
        %s175 = scalar_lea.vmem %s0, %s174
        %p176 = pneg %p52
        %p177 = pneg %p49
        %p178 = pneg %p73
        %p179 = pneg %p70
        %p180 = pneg %p94
        %p181 = pneg %p91
        %p182 = pneg %p122
        %p183 = pneg %p119
        %s184 = sand.u32 %s109, 1
        %s185 = scalar_lea.sflag [#allocation3], %s184
        %s186 = sand.u32 %s109, 1
        %s187 = smul.addr %s186, 48
        %s188 = scalar_lea.vmem [#allocation2], %s187
        %s189 = smul.u32 2, %s22
        %p190 = scmp.lt.s32.totalorder %s21, 1
        %s191 = scalar_select %p190, %s21, 1
        %p192 = scmp.lt.s32.totalorder %s189, 1
        %s193 = scalar_select %p192, %s189, 1
        %s194 = smul.addr %s191, 50
        %s195 = sadd.s32 %s193, %s194
        %s196 = smul.addr %s195, 8
        %s197 = scalar_lea.vmem %s0, %s196
        %s198 = smul.u32 2, %s22
        %s199 = smul.u32 2, %s22
        %v200 = vld [vmem:[%s1] sm:$0xff]
        %v201 = vld [vmem:[%s1 + $0x8] sm:$0xff]
        %v202 = vld [vmem:[%s1 + $0x10] sm:$0xff]
        %v203 = vld [vmem:[%s1 + $0x18] sm:$0xff]
        %v204 = vld [vmem:[%s1 + $0x20] sm:$0xff]
        %v205 = vld [vmem:[%s1 + $0x28] sm:$0xff]
        %v206 = vld [vmem:[%s197] sm:$0xff]
        %v207 = vld [vmem:[%s197 + $0x8] sm:$0xff]
        %v208 = vld [vmem:[%s197 + $0x10] sm:$0xff]
        %v209 = vld [vmem:[%s197 + $0x18] sm:$0xff]
        %v210 = vld [vmem:[%s197 + $0x20] sm:$0xff]
        %v211 = vld [vmem:[%s197 + $0x28] sm:$0xff]
        %v212 = vld [vmem:[%s197 + $0x30] sm:$0xff]
        %v213 = vld [vmem:[%s197 + $0x38] sm:$0xff]
        %v214 = vld [vmem:[%s197 + $0x40] sm:$0xff]
        %v215 = vld [vmem:[%s197 + $0x48] sm:$0xff]
        %v216 = vld [vmem:[%s197 + $0x50] sm:$0xff]
        %v217 = vld [vmem:[%s197 + $0x58] sm:$0xff]
        %v218 = vld [vmem:[%s197 + $0x60] sm:$0xff]
        %v219 = vld [vmem:[%s197 + $0x68] sm:$0xff]
        %v220 = vld [vmem:[%s197 + $0x70] sm:$0xff]
        %v221 = vld [vmem:[%s197 + $0x78] sm:$0xff]
        %v222 = vld [vmem:[%s197 + $0x80] sm:$0xff]
        %v223 = vld [vmem:[%s197 + $0x88] sm:$0xff]
        %v224 = vld [vmem:[%s197 + $0x90] sm:$0xff]
        %v225 = vld [vmem:[%s197 + $0x98] sm:$0xff]
        %v226 = vld [vmem:[%s197 + $0xa0] sm:$0xff]
        %v227 = vld [vmem:[%s197 + $0xa8] sm:$0xff]
        %v228 = vld [vmem:[%s197 + $0xb0] sm:$0xff]
        %v229 = vld [vmem:[%s197 + $0xb8] sm:$0xff]
        %v230 = vld [vmem:[%s197 + $0xc0] sm:$0xff]
        %v231 = vld [vmem:[%s197 + $0xc8] sm:$0xff]
        %v232 = vld [vmem:[%s197 + $0xd0] sm:$0xff]
        %v233 = vld [vmem:[%s197 + $0xd8] sm:$0xff]
        %v234 = vld [vmem:[%s197 + $0xe0] sm:$0xff]
        %v235 = vld [vmem:[%s197 + $0xe8] sm:$0xff]
        %v236 = vld [vmem:[%s197 + $0xf0] sm:$0xff]
        %v237 = vld [vmem:[%s197 + $0xf8] sm:$0xff]
        %v238 = vld [vmem:[%s197 + $0x100] sm:$0xff]
        %v239 = vld [vmem:[%s197 + $0x108] sm:$0xff]
        %v240 = vld [vmem:[%s197 + $0x110] sm:$0xff]
        %v241 = vld [vmem:[%s197 + $0x118] sm:$0xff]
        %v242 = vld [vmem:[%s197 + $0x120] sm:$0xff]
        %v243 = vld [vmem:[%s197 + $0x128] sm:$0xff]
        %v244 = vld [vmem:[%s197 + $0x130] sm:$0xff]
        %v245 = vld [vmem:[%s197 + $0x138] sm:$0xff]
        %v246 = vld [vmem:[%s197 + $0x140] sm:$0xff]
        %v247 = vld [vmem:[%s197 + $0x148] sm:$0xff]
        %v248 = vld [vmem:[%s197 + $0x150] sm:$0xff]
        %v249 = vld [vmem:[%s197 + $0x158] sm:$0xff]
        %v250 = vld [vmem:[%s197 + $0x160] sm:$0xff]
        %v251 = vld [vmem:[%s197 + $0x168] sm:$0xff]
        %v252 = vld [vmem:[%s197 + $0x170] sm:$0xff]
        %v253 = vld [vmem:[%s197 + $0x178] sm:$0xff]
        %v254 = vld [vmem:[%s197 + $0x180] sm:$0xff]
        %v255 = vld [vmem:[%s197 + $0x188] sm:$0xff]
        %v256 = vld [vmem:[%s2] sm:$0xff]
        %v257 = vld [vmem:[%s2 + $0x8] sm:$0xff]
        %v258 = vld [vmem:[%s2 + $0x10] sm:$0xff]
        %260 = vset.pattern.permute.xlu0 0
        %261 = vperm.xlu0 %260, %v256
        %v262 = vpop.permute.xlu0 %261
        %265 = vset.pattern.permute.xlu0 0
        %266 = vperm.xlu0 %265, %v257
        %v267 = vpop.permute.xlu0 %266
        %270 = vset.pattern.permute.xlu0 0
        %271 = vperm.xlu0 %270, %v258
        %v272 = vpop.permute.xlu0 %271
        %vm274 = vcmask 588800
        %v276 = vsel %vm274, %v201, 0
        %v279 = vsel %vm274, %v203, 0
        %v282 = vsel %vm274, %v205, 0
        %284 = vmatprep.subr.mxu0 %v207
        %285 = vmatpush1.msra.mxu0 %v206
        %286 = vmatprep.subr.mxu0 %v209
        %287 = vmatpush1.msra.mxu0 %v208
        %288 = vmatprep.subr.mxu0 %v211
        %289 = vmatpush1.msra.mxu0 %v210
        %290 = vmatprep.subr.mxu0 %v213
        %291 = vmatpush1.msra.mxu0 %v212
        %292 = vmatprep.subr.mxu0 %v215
        %293 = vmatpush1.msra.mxu0 %v214
        %294 = vmatprep.subr.mxu0 %v217
        %295 = vmatpush1.msra.mxu0 %v216
        %296 = vmatprep.subr.mxu0 %v219
        %297 = vmatpush1.msra.mxu0 %v218
        %298 = vmatprep.subr.mxu0 %v221
        %299 = vmatpush1.msra.mxu0 %v220
        %300 = vmatprep.subr.mxu0 %v223
        %301 = vmatpush1.msra.mxu0 %v222
        %302 = vmatprep.subr.mxu0 %v225
        %303 = vmatpush1.msra.mxu0 %v224
        %304 = vmatprep.subr.mxu0 %v227
        %305 = vmatpush1.msra.mxu0 %v226
        %306 = vmatprep.subr.mxu0 %v229
        %307 = vmatpush1.msra.mxu0 %v228
        %308 = vmatprep.subr.mxu0 %v231
        %309 = vmatpush1.msra.mxu0 %v230
        %310 = vmatprep.subr.mxu0 %v233
        %311 = vmatpush1.msra.mxu0 %v232
        %312 = vmatprep.subr.mxu0 %v235
        %313 = vmatpush1.msra.mxu0 %v234
        %314 = vmatprep.subr.mxu0 %v237
        %315 = vmatpush1.msra.mxu0 %v236
        %316 = vmatprep.subr.mxu0 %v239
        %317 = vmatpush1.msra.mxu0 %v238
        %318 = vmatprep.subr.mxu0 %v241
        %319 = vmatpush1.msra.mxu0 %v240
        %320 = vmatprep.subr.mxu0 %v243
        %321 = vmatpush1.msra.mxu0 %v242
        %322 = vmatprep.subr.mxu0 %v245
        %323 = vmatpush1.msra.mxu0 %v244
        %324 = vmatprep.subr.mxu0 %v247
        %325 = vmatpush1.msra.mxu0 %v246
        %326 = vmatprep.subr.mxu0 %v249
        %327 = vmatpush1.msra.mxu0 %v248
        %328 = vmatprep.subr.mxu0 %v251
        %329 = vmatpush1.msra.mxu0 %v250
        %330 = vmatprep.subr.mxu0 %v253
        %331 = vmatpush1.msra.mxu0 %v252
        %332 = vmatprep.subr.mxu0 %v255
        %333 = vmatpush1.msra.mxu0 %v254
        %334 = vmatprep.subr.mxu0 0.0
        %335 = vmatpush1.msra.mxu0 0.0
        %336 = vmatprep.subr.mxu0 0.0
        %337 = vmatpush1.msra.mxu0 0.0
        %338 = vmatprep.subr.mxu0 0.0
        %339 = vmatpush1.msra.mxu0 0.0
        %340 = vmatprep.subr.mxu0 0.0
        %341 = vmatpush1.msra.mxu0 0.0
        %342 = vmatprep.subr.mxu0 0.0
        %343 = vmatpush1.msra.mxu0 0.0
        %344 = vmatprep.subr.mxu0 0.0
        %345 = vmatpush1.msra.mxu0 0.0
        %346 = vmatprep.subr.mxu0 0.0
        %347 = vmatpush1.msra.mxu0 0.0
        %348 = vmatprep.mubr.f32.mxu0 %v276
        %349 = vmatmul.mubr.f32.gmra.mrb[0].mxu0 %v200
        %v350 = vpop.f32.mrb[0].mxu0
        %v351 = vadd.f32 %v262, %v350
        %v352 = vpop.f32.mrb[0].mxu0
        %v353 = vadd.f32 %v262, %v352
        %354 = vmatprep.mubr.f32.mxu0 %v279
        %355 = vmatmul.mubr.f32.gmra.mrb[0].mxu0 %v202
        %v356 = vpop.f32.mrb[0].mxu0
        %v357 = vadd.f32 %v267, %v356
        %v358 = vpop.f32.mrb[0].mxu0
        %v359 = vadd.f32 %v267, %v358
        %360 = vmatprep.mubr.f32.mxu0 %v282
        %361 = vmatmul.mubr.f32.gmra.mrb[0].mxu0 %v204
        %v362 = vpop.f32.mrb[0].mxu0
        %v363 = vadd.f32 %v272, %v362
        %v364 = vpop.f32.mrb[0].mxu0
        %v365 = vadd.f32 %v272, %v364
        %366 = vdwg.mxu0
        %v367 = vmax.f32 %v351, 0.0
        %v368 = vmax.f32 %v353, 0.0
        %v369 = vmax.f32 %v357, 0.0
        %v370 = vmax.f32 %v359, 0.0
        %v371 = vmax.f32 %v363, 0.0
        %v372 = vmax.f32 %v365, 0.0
        %373 = vst [vmem:[%s188] sm:$0xff] %v367
        %374 = vst [vmem:[%s188 + $0x8] sm:$0xff] %v368
        %375 = vst [vmem:[%s188 + $0x10] sm:$0xff] %v369
        %376 = vst [vmem:[%s188 + $0x18] sm:$0xff] %v370
        %377 = vst [vmem:[%s188 + $0x20] sm:$0xff] %v371
        %378 = vst [vmem:[%s188 + $0x28] sm:$0xff] %v372
        %s379 = sand.u32 %s109, 1
        %s380 = scalar_lea.sflag [#allocation3], %s379
        %s381 = sand.u32 %s109, 1
        %s382 = smul.addr %s381, 48
        %s383 = scalar_lea.vmem [#allocation2], %s382
        // Predicated region
        $region33: #{convolutional_net_forward.1} parent=31 // pred_check
          %p384 = pneg %p119
        $region34: #{convolutional_net_forward.1} parent=31 // pred_check_branch
          %386 = sbr.rel (%p384) target = $region36
        $region35: #{convolutional_net_forward.1} parent=31 // pred_region
          %s387 = smul.u32 2, %s22
          %s389 = ssub.s32 768, 768
          %390 = vsyncadd %s380, %s389
          %s391 = smul.addr %s21, 6
          %s392 = sadd.s32 %s387, %s391
          %s393 = smul.addr %s392, 128
          %s394 = scalar_lea.hbm %s3, %s393
          %s395 = sshll.u32 %s383, 4
          %s396 = int_to_ptr.vmem [resolvable:$true] %s395
          %401 = dma.vmem_to_hbm [thread:$0]  %s396, 768, %s394, %s380, 256, 256, 16
        $region36: #{convolutional_net_forward.1} parent=31 // pred_fallthru
          _
      $region32: #{convolutional_net_forward.1} parent=5 // pred_fallthru
        _
      %p402 = scmp.le.s32.totalorder 2, %s12
      // Predicated region
      $region37: #{convolutional_net_forward.1} parent=5 // pred_check
        %p403 = pneg %p402
      $region38: #{convolutional_net_forward.1} parent=5 // pred_check_branch
        %405 = sbr.rel (%p403) target = $region40
      $region39: #{convolutional_net_forward.1} parent=5 // pred_region
        %s406 = ssub.s32 %s12, 2
        // Predicated region
        $region41: #{convolutional_net_forward.1} parent=39 // pred_check
          %p407 = pneg %p125
        $region42: #{convolutional_net_forward.1} parent=39 // pred_check_branch
          %409 = sbr.rel (%p407) target = $region44
        $region43: #{convolutional_net_forward.1} parent=39 // pred_region
          %s410 = sand.u32 %s110, 1
          %s411 = scalar_lea.sflag [#allocation3], %s410
          %s412 = sand.u32 %s110, 1
          %s413 = smul.addr %s412, 48
          %s414 = scalar_lea.vmem [#allocation2], %s413
          %415 = dma.done %s411, 768
        $region44: #{convolutional_net_forward.1} parent=39 // pred_fallthru
          _
      $region40: #{convolutional_net_forward.1} parent=5 // pred_fallthru
        _
    $region6: #{convolutional_net_forward.1} parent=1 // loop_footer
      %s16 = sadd.s32 1, %s12
    $region7: #{convolutional_net_forward.1} parent=1 // loop_footer_branch
      %11 = sbr.rel target = $region3
    $region8: #{convolutional_net_forward.1} parent=1 // loop_exit
      _
    %416 = vsyncpa [#allocation3], 1
    %s417 = scalar_lea.sflag [#allocation3], 1
    %418 = vsyncpa %s417, 1

</llo_original>
